<compile_context>
chip_gen: v7x
topology: tpu7x:2x2x1
jax: 0.10.0
libtpu: 0.0.40
codegen_flags: <defaults>
</compile_context>

<pallas_src>
import functools

import jax
import jax.numpy as jnp
from jax.experimental import pallas as pl
from jax.experimental.pallas import tpu as pltpu


# ----------------------------------------------------------------------------
# Kernels
# ----------------------------------------------------------------------------
def _conv_tile_acc(xwin_ref, w_ref, th, w_out, cin, cout, im2col):
    """Shared 3x3 conv body for one (1,1,TH+2,W+2,Cin) row-tile window.

    Returns f32 accumulator of shape (TH*W, Cout). MXU operands are bf16.
    """
    x = xwin_ref[...][0, 0]                                   # (TH+2, W+2, Cin)
    if im2col:
        # im2col over the 3x3 taps -> one wide-K matmul (K = 9*Cin).
        taps = [x[kh:kh + th, kw:kw + w_out, :]
                for kh in range(3) for kw in range(3)]
        patch = jnp.concatenate(taps, axis=-1).reshape(th * w_out, 9 * cin)
        acc = jnp.dot(patch.astype(jnp.bfloat16), w_ref[...],
                      preferred_element_type=jnp.float32)
    else:
        # Wide-channel path: 9 per-tap dots (K = Cin already MXU-friendly).
        acc = jnp.zeros((th * w_out, cout), jnp.float32)
        for kh in range(3):
            for kw in range(3):
                p = x[kh:kh + th, kw:kw + w_out, :].reshape(th * w_out, cin)
                acc = acc + jnp.dot(p.astype(jnp.bfloat16), w_ref[kh, kw],
                                    preferred_element_type=jnp.float32)
    return acc


def conv3x3_rows_kernel(xwin_ref, w_ref, b_ref, o_ref, *, apply_relu, im2col):
    """3x3 conv (stride 1, pad 1) on one row tile of one image.

    xwin_ref: (1, 1, TH+2, W+2, Cin)   w_ref: (9*Cin, Cout) bf16 or (3,3,Cin,Cout) bf16
    b_ref:    (1, Cout) f32            o_ref: (1, TH, W, Cout) f32
    """
    cin = xwin_ref.shape[-1]
    _, th, w_out, cout = o_ref.shape
    acc = _conv_tile_acc(xwin_ref, w_ref, th, w_out, cin, cout, im2col)
    acc = acc + b_ref[...]                                     # (1,Cout) broadcast, f32
    if apply_relu:
        acc = jnp.maximum(acc, 0.0)
    o_ref[...] = acc.reshape(1, th, w_out, cout).astype(o_ref.dtype)


def conv3x3_res_pool_kernel(xwin_ref, w_ref, b_ref, res_ref, pool_ref, *, im2col):
    """3x3 conv + residual add + ReLU + AdaptiveAvgPool channel-sum (fused epilogue).

    res_ref:  (1, TH, W, Cout) f32   residual (stem output rows)
    pool_ref: (1, 1, Cout)     f32   per-image channel sums, accumulated across the
                                     row-tile grid axis (marked "arbitrary").
    """
    cin = xwin_ref.shape[-1]
    _, th, w_out, cout = res_ref.shape
    acc = _conv_tile_acc(xwin_ref, w_ref, th, w_out, cin, cout, im2col)
    acc = acc + b_ref[...]
    y = jnp.maximum(acc + res_ref[...].reshape(th * w_out, cout), 0.0)
    part = jnp.sum(y, axis=0, keepdims=True).reshape(1, 1, cout)

    @pl.when(pl.program_id(1) == 0)
    def _():
        pool_ref[...] = jnp.zeros_like(pool_ref)

    pool_ref[...] += part


def pool_fc_head_kernel(pool_ref, fcw_ref, fcb_ref, mask_ref, hw_ref, hb_ref,
                        o_ref, *, inv_hw):
    """avgpool-scale + Linear(C, feat_dim) + dropout + fused [fc_xyz|fc_wpqr].

    pool_ref: (N, 1, C)  fcw_ref: (C, F) bf16   fcb_ref: (1, F) f32
    mask_ref: (N, F) f32 (pre-scaled keep mask)
    hw_ref:   (F, 128) bf16 (6 real cols, zero-padded lane-dense)  hb_ref: (1, 128)
    o_ref:    (N, 128) f32  (sliced to [:, :6] outside)
    """
    n, _, c = pool_ref.shape
    pooled = pool_ref[...].reshape(n, c) * inv_hw
    feat = jnp.dot(pooled.astype(jnp.bfloat16), fcw_ref[...],
                   preferred_element_type=jnp.float32) + fcb_ref[...]
    feat = feat * mask_ref[...]                                # dropout (inverted scaling)
    out = jnp.dot(feat.astype(jnp.bfloat16), hw_ref[...],
                  preferred_element_type=jnp.float32) + hb_ref[...]
    o_ref[...] = out


# ----------------------------------------------------------------------------
# Wrappers (pallas_call plumbing)
# ----------------------------------------------------------------------------
_VMEM = pl.BlockSpec(memory_space=pltpu.MemorySpace.VMEM)


def _make_row_windows(x_nhwc, th):
    """(N,H,W,C) -> (N, H//th, th+2, W+2, C) overlapping row windows (1-px halo).

    TODO(synk): at real PoseNet scale use pl.Element halo indexing or manual DMA
    to avoid materializing the overlapping windows in HBM.
    """
    n, h, w, c = x_nhwc.shape
    assert h % th == 0, "row tile must divide H"
    xp = jnp.pad(x_nhwc, ((0, 0), (1, 1), (1, 1), (0, 0)))
    wins = [xp[:, r * th:r * th + th + 2] for r in range(h // th)]
    return jnp.stack(wins, axis=1)


def _prep_weight(w, cin, cout):
    """Reshape for im2col if channels are narrow; cast MXU operand to bf16."""
    im2col = 9 * cin <= 64
    if im2col:
        wk = w.reshape(9 * cin, cout).astype(jnp.bfloat16)
        w_spec = pl.BlockSpec((9 * cin, cout), lambda n, r: (0, 0))
    else:
        wk = w.astype(jnp.bfloat16)
        w_spec = pl.BlockSpec((3, 3, cin, cout), lambda n, r: (0, 0, 0, 0))
    return wk, w_spec, im2col


def conv3x3(x_nhwc, w, b, *, apply_relu, th=8):
    n, h, w_sp, cin = x_nhwc.shape
    cout = w.shape[-1]
    n_r = h // th
    xwin = _make_row_windows(x_nhwc, th)
    wk, w_spec, im2col = _prep_weight(w, cin, cout)
    return pl.pallas_call(
        functools.partial(conv3x3_rows_kernel, apply_relu=apply_relu, im2col=im2col),
        out_shape=jax.ShapeDtypeStruct((n, h, w_sp, cout), jnp.float32),
        grid=(n, n_r),
        in_specs=[
            pl.BlockSpec((1, 1, th + 2, w_sp + 2, cin),
                         lambda i, r: (i, r, 0, 0, 0)),
            w_spec,                                             # resident (constant idx)
            pl.BlockSpec((1, cout), lambda i, r: (0, 0)),
        ],
        out_specs=pl.BlockSpec((1, th, w_sp, cout), lambda i, r: (i, r, 0, 0)),
        compiler_params=pltpu.CompilerParams(
            dimension_semantics=("parallel", "parallel")),
    )(xwin, wk, b)


def conv3x3_res_pool(x_nhwc, w, b, res_nhwc, *, th=8):
    n, h, w_sp, cin = x_nhwc.shape
    cout = w.shape[-1]
    n_r = h // th
    xwin = _make_row_windows(x_nhwc, th)
    wk, w_spec, im2col = _prep_weight(w, cin, cout)
    return pl.pallas_call(
        functools.partial(conv3x3_res_pool_kernel, im2col=im2col),
        out_shape=jax.ShapeDtypeStruct((n, 1, cout), jnp.float32),   # channel sums
        grid=(n, n_r),
        in_specs=[
            pl.BlockSpec((1, 1, th + 2, w_sp + 2, cin),
                         lambda i, r: (i, r, 0, 0, 0)),
            w_spec,
            pl.BlockSpec((1, cout), lambda i, r: (0, 0)),
            pl.BlockSpec((1, th, w_sp, cout), lambda i, r: (i, r, 0, 0)),
        ],
        # same output block across the row axis -> resident accumulator
        out_specs=pl.BlockSpec((1, 1, cout), lambda i, r: (i, 0, 0)),
        compiler_params=pltpu.CompilerParams(
            dimension_semantics=("parallel", "arbitrary")),
    )(xwin, wk, b, res_nhwc)


def pool_fc_head(pool_sums, fc_w, fc_b, mask, head_w, head_b, inv_hw):
    n = pool_sums.shape[0]
    out = pl.pallas_call(
        functools.partial(pool_fc_head_kernel, inv_hw=inv_hw),
        out_shape=jax.ShapeDtypeStruct((n, head_w.shape[-1]), jnp.float32),
        in_specs=[_VMEM] * 6,
        out_specs=_VMEM,
    )(pool_sums, fc_w.astype(jnp.bfloat16), fc_b, mask,
      head_w.astype(jnp.bfloat16), head_b)
    return out[:, :6]                               # drop lane padding -> (N, 6)


# ----------------------------------------------------------------------------
# PoseNet forward
# ----------------------------------------------------------------------------
def _dropout_mask(key, shape, droprate):
    # TODO(synk): mask generated with jax.random outside the kernel; the in-kernel
    # hardware PRNG (pltpu.prng_seed) has no CPU-interpret lowering.
    keep = (jax.random.uniform(key, shape) >= droprate).astype(jnp.float32)
    return keep * (1.0 / (1.0 - droprate))


def posenet_forward(x_nchw, params, dropout_key, droprate=0.5, training=True, th=8):
    # NCHW (PyTorch) -> NHWC (kernel layout)
    x = jnp.transpose(x_nchw, (0, 2, 3, 1)).astype(jnp.float32)
    n, h, w, _ = x.shape

    # --- feature extractor: conv stem + one residual BasicBlock (fused tail) ---
    x = conv3x3(x, params["stem_w"], params["stem_b"], apply_relu=True, th=th)
    y = conv3x3(x, params["b1_w"], params["b1_b"], apply_relu=True, th=th)
    # b2 conv + residual(x) + ReLU + AdaptiveAvgPool channel-sum, fused:
    pool_sums = conv3x3_res_pool(y, params["b2_w"], params["b2_b"], x, th=th)

    # --- Linear(fe_out_planes, feat_dim) + F.dropout(p) + fc_xyz/fc_wpqr + cat ---
    feat_dim = params["fc_w"].shape[-1]
    if droprate > 0.0 and training:          # F.dropout defaults to training=True
        mask = _dropout_mask(dropout_key, (n, feat_dim), droprate)
    else:
        mask = jnp.ones((n, feat_dim), jnp.float32)
    return pool_fc_head(pool_sums, params["fc_w"], params["fc_b"], mask,
                        params["head_w"], params["head_b"], 1.0 / (h * w))


# ----------------------------------------------------------------------------
# Deterministic parameter init (kaiming-normal, zero bias — as in __init__)
# ----------------------------------------------------------------------------
def kaiming(key, shape, fan_in):
    return jax.random.normal(key, shape, jnp.float32) * jnp.sqrt(2.0 / fan_in)


def init_params(key, cin, c_feat, feat_dim):
    ks = jax.random.split(key, 6)
    params = {
        "stem_w": kaiming(ks[0], (3, 3, cin, c_feat), 9 * cin),
        "stem_b": jnp.zeros((1, c_feat), jnp.float32),
        "b1_w": kaiming(ks[1], (3, 3, c_feat, c_feat), 9 * c_feat),
        "b1_b": jnp.zeros((1, c_feat), jnp.float32),
        "b2_w": kaiming(ks[2], (3, 3, c_feat, c_feat), 9 * c_feat),
        "b2_b": jnp.zeros((1, c_feat), jnp.float32),
        # feature_extractor.fc = Linear(fe_out_planes, feat_dim)
        "fc_w": kaiming(ks[3], (c_feat, feat_dim), c_feat),
        "fc_b": jnp.zeros((1, feat_dim), jnp.float32),
    }
    # fc_xyz (feat_dim->3) and fc_wpqr (feat_dim->3), fused, then zero-padded to a
    # lane-dense 128-wide output (sliced back to 6 outside the kernel).
    w_xyz = kaiming(ks[4], (feat_dim, 3), feat_dim)
    w_wpqr = kaiming(ks[5], (feat_dim, 3), feat_dim)
    head_w = jnp.concatenate([w_xyz, w_wpqr], axis=1)          # (feat_dim, 6)
    params["head_w"] = jnp.pad(head_w, ((0, 0), (0, 128 - 6)))  # (feat_dim, 128)
    params["head_b"] = jnp.zeros((1, 128), jnp.float32)
    return params


# TODO(synk): the backward-pass NaN-filtering hook (filter_hook) has no forward
#             semantics and is not translated.

if __name__ == "__main__":
    N, Cin, H, W = 2, 4, 16, 16      # small stand-ins (real PoseNet: Cin=3, 224x224)
    C_FEAT, FEAT_DIM = 32, 64        # stand-ins for fe_out_planes=512, feat_dim=2048

    key = jax.random.PRNGKey(0)
    k_x, k_p, k_d = jax.random.split(key, 3)
    x = jax.random.normal(k_x, (N, Cin, H, W), jnp.float32)    # NCHW input
    params = init_params(k_p, Cin, C_FEAT, FEAT_DIM)

    out = posenet_forward(x, params, k_d, droprate=0.5)        # (N, 6)
    out = jax.block_until_ready(out)
    assert out.shape == (N, 6) and out.dtype == jnp.float32
    print("KERNEL_OK")
</pallas_src>

<mosaic_0001>
module attributes {stable_mosaic.version = 11 : i64} {
  func.func @conv3x3_rows_kernel(%arg0: i32, %arg1: i32, %arg2: memref<1x1x10x18x4xf32, #tpu.memory_space<vmem>>, %arg3: memref<36x32xbf16, #tpu.memory_space<vmem>>, %arg4: memref<1x32xf32, #tpu.memory_space<vmem>>, %arg5: memref<1x8x16x32xf32, #tpu.memory_space<vmem>>) attributes {dimension_semantics = [#tpu.dimension_semantics<parallel>, #tpu.dimension_semantics<parallel>], iteration_bounds = array<i64: 2, 2>, scalar_prefetch = 0 : i64, scratch_operands = 0 : i64, tpu.core_type = #tpu.core_type<tc>, window_params = [{transform_indices = @transform_0, window_bounds = array<i64: 1, 1, 10, 18, 4>}, {pipeline_mode = #tpu.pipeline_mode<synchronous>, transform_indices = @transform_1, window_bounds = array<i64: 36, 32>}, {pipeline_mode = #tpu.pipeline_mode<synchronous>, transform_indices = @transform_2, window_bounds = array<i64: 1, 32>}, {transform_indices = @transform_3, window_bounds = array<i64: 1, 8, 16, 32>}]} {
    %c0 = arith.constant 0 : index
    %c0_0 = arith.constant 0 : index
    %c0_1 = arith.constant 0 : index
    %c0_2 = arith.constant 0 : index
    %c0_3 = arith.constant 0 : index
    %0 = vector.load %arg2[%c0, %c0_0, %c0_1, %c0_2, %c0_3] : memref<1x1x10x18x4xf32, #tpu.memory_space<vmem>>, vector<1x1x10x18x4xf32>
    %1 = vector.shape_cast %0 : vector<1x1x10x18x4xf32> to vector<10x18x4xf32>
    %2 = vector.extract_strided_slice %1 {offsets = [0, 0, 0], sizes = [8, 16, 4], strides = [1, 1, 1]} : vector<10x18x4xf32> to vector<8x16x4xf32>
    %3 = vector.extract_strided_slice %1 {offsets = [0, 1, 0], sizes = [8, 16, 4], strides = [1, 1, 1]} : vector<10x18x4xf32> to vector<8x16x4xf32>
    %4 = vector.extract_strided_slice %1 {offsets = [0, 2, 0], sizes = [8, 16, 4], strides = [1, 1, 1]} : vector<10x18x4xf32> to vector<8x16x4xf32>
    %5 = vector.extract_strided_slice %1 {offsets = [1, 0, 0], sizes = [8, 16, 4], strides = [1, 1, 1]} : vector<10x18x4xf32> to vector<8x16x4xf32>
    %6 = vector.extract_strided_slice %1 {offsets = [1, 1, 0], sizes = [8, 16, 4], strides = [1, 1, 1]} : vector<10x18x4xf32> to vector<8x16x4xf32>
    %7 = vector.extract_strided_slice %1 {offsets = [1, 2, 0], sizes = [8, 16, 4], strides = [1, 1, 1]} : vector<10x18x4xf32> to vector<8x16x4xf32>
    %8 = vector.extract_strided_slice %1 {offsets = [2, 0, 0], sizes = [8, 16, 4], strides = [1, 1, 1]} : vector<10x18x4xf32> to vector<8x16x4xf32>
    %9 = vector.extract_strided_slice %1 {offsets = [2, 1, 0], sizes = [8, 16, 4], strides = [1, 1, 1]} : vector<10x18x4xf32> to vector<8x16x4xf32>
    %10 = vector.extract_strided_slice %1 {offsets = [2, 2, 0], sizes = [8, 16, 4], strides = [1, 1, 1]} : vector<10x18x4xf32> to vector<8x16x4xf32>
    %11 = tpu.concatenate %2, %3, %4, %5, %6, %7, %8, %9, %10 in 2 : vector<8x16x4xf32>, vector<8x16x4xf32>, vector<8x16x4xf32>, vector<8x16x4xf32>, vector<8x16x4xf32>, vector<8x16x4xf32>, vector<8x16x4xf32>, vector<8x16x4xf32>, vector<8x16x4xf32> -> vector<8x16x36xf32>
    %12 = vector.shape_cast %11 : vector<8x16x36xf32> to vector<128x36xf32>
    %13 = arith.truncf %12 : vector<128x36xf32> to vector<128x36xbf16>
    %c0_4 = arith.constant 0 : index
    %c0_5 = arith.constant 0 : index
    %14 = vector.load %arg3[%c0_4, %c0_5] : memref<36x32xbf16, #tpu.memory_space<vmem>>, vector<36x32xbf16>
    %cst = arith.constant dense<0.000000e+00> : vector<128x32xf32>
    %15 = tpu.matmul %13, %14, %cst {dimension_numbers = #tpu.dot_dimension_numbers<[1], [0], [0], [1], [0, 0, 1, 1], [], []>} : vector<128x36xbf16>, vector<36x32xbf16>, vector<128x32xf32> -> vector<128x32xf32>
    %c0_6 = arith.constant 0 : index
    %c0_7 = arith.constant 0 : index
    %16 = vector.load %arg4[%c0_6, %c0_7] : memref<1x32xf32, #tpu.memory_space<vmem>>, vector<1x32xf32>
    %17 = vector.broadcast %16 : vector<1x32xf32> to vector<128x32xf32>
    %18 = arith.addf %15, %17 : vector<128x32xf32>
    %cst_8 = arith.constant 0.000000e+00 : f32
    %19 = vector.broadcast %cst_8 : f32 to vector<128x32xf32>
    %20 = arith.maximumf %18, %19 : vector<128x32xf32>
    %21 = vector.shape_cast %20 : vector<128x32xf32> to vector<1x8x16x32xf32>
    %c0_9 = arith.constant 0 : index
    %c0_10 = arith.constant 0 : index
    %c0_11 = arith.constant 0 : index
    %c0_12 = arith.constant 0 : index
    %22 = vector.load %arg5[%c0_9, %c0_10, %c0_11, %c0_12] : memref<1x8x16x32xf32, #tpu.memory_space<vmem>>, vector<1x8x16x32xf32>
    tpu.vector_store %arg5[%c0_9, %c0_10, %c0_11, %c0_12], %21 {strides = array<i32>} : memref<1x8x16x32xf32, #tpu.memory_space<vmem>>, vector<1x8x16x32xf32>,
    return
  }
  func.func @transform_0(%arg0: i32, %arg1: i32) -> (i32, i32, i32, i32, i32) {
    %c0_i32 = arith.constant 0 : i32
    %c0_i32_0 = arith.constant 0 : i32
    %c0_i32_1 = arith.constant 0 : i32
    %c0_i32_2 = arith.constant 0 : i32
    return %arg0, %arg1, %c0_i32, %c0_i32_0, %c0_i32_1 : i32, i32, i32, i32, i32
  }
  func.func @transform_1(%arg0: i32, %arg1: i32) -> (i32, i32) {
    %c0_i32 = arith.constant 0 : i32
    %c0_i32_0 = arith.constant 0 : i32
    %c0_i32_1 = arith.constant 0 : i32
    return %c0_i32, %c0_i32_0 : i32, i32
  }
  func.func @transform_2(%arg0: i32, %arg1: i32) -> (i32, i32) {
    %c0_i32 = arith.constant 0 : i32
    %c0_i32_0 = arith.constant 0 : i32
    %c0_i32_1 = arith.constant 0 : i32
    return %c0_i32, %c0_i32_0 : i32, i32
  }
  func.func @transform_3(%arg0: i32, %arg1: i32) -> (i32, i32, i32, i32) {
    %c0_i32 = arith.constant 0 : i32
    %c0_i32_0 = arith.constant 0 : i32
    %c0_i32_1 = arith.constant 0 : i32
    return %arg0, %arg1, %c0_i32, %c0_i32_0 : i32, i32, i32, i32
  }
}

</mosaic_0001>

<llo_original>
// kernel: tpu_custom_call.1
$region0: #{tpu_custom_call.1}
  #allocation0 [shape = 'u32[]', space=smem, size = 0x4, offset = 0x4, fixed_abs, tag = 'smem constant byte address 0x4 - core index']
  #allocation1 [shape = 'u32[144,128]{1,0:T(1,128)}', space=vmem, size = 0x12000, scoped, tag = 'internal scratch']
  %s0 = inlined_call_operand.vmem [shape: f32[2,2,10,18,4], index: 0, kind: input, shape index: {}]
  %s1 = inlined_call_operand.vmem [shape: bf16[36,32], index: 1, kind: input, shape index: {}]
  %s2 = inlined_call_operand.vmem [shape: f32[1,32], index: 2, kind: input, shape index: {}]
  %s3 = inlined_call_operand.hbm [shape: f32[2,16,16,32], index: 3, kind: output, shape index: {}]
  %s4 = sld [smem:[#allocation0]]
  $region45: #{tpu_custom_call.1} parent=0
    _
  %s6 = ssub.s32 1, %s4
  %s7 = scalar_select 0, %s6, %s4
  $region1: #{tpu_custom_call.1} parent=0
    #allocation2 [shape = 'u8[131072]{0}', space=vmem, size = 0x20000, scoped, tag = 'output window, operand 0']
    #allocation3 [shape = 's32[2]{0}', space=sflag, size = 0x8, scoped, tag = 'scoped memory for tpu_custom_call.1']
    %8 = vsyncpa [#allocation3], 0
    %s9 = scalar_lea.sflag [#allocation3], 1
    %10 = vsyncpa %s9, 0
    loop: start=0, step=1, limit=6
    $region2: #{tpu_custom_call.1} parent=1 // loop_pre_header
      _
    $region3: #{tpu_custom_call.1} parent=1 // loop_header
      %s12 = sphi 0, %s16
      %p13 = scmp.ge.s32.totalorder %s12, 6
      %s19 = sphi 0, %s31
      %s20 = sphi 0, %s27
      %s21 = sphi 0, %s19
      %s22 = sphi 0, %s20
      %s23 = sphi 0, %s21
      %s24 = sphi 0, %s22
      %s36 = sphi 0, %s38
      %s39 = sphi 0, %s36
      %s40 = sphi 0, %s39
      %s56 = sphi 0, %s40
      %s60 = sphi 0, %s60
      %s62 = sphi 0, %s60
      %s63 = sphi 0, %s62
      %s77 = sphi 0, %s63
      %s81 = sphi 0, %s81
      %s83 = sphi 0, %s81
      %s84 = sphi 0, %s83
      %s98 = sphi 0, %s84
      %s106 = sphi 0, %s108
      %s109 = sphi 0, %s106
      %s110 = sphi 0, %s109
      %s126 = sphi 0, %s110
    $region4: #{tpu_custom_call.1} parent=1 // loop_header_branch
      %15 = sbr.rel (%p13) target = $region8
    $region5: #{tpu_custom_call.1} parent=1 // loop_body
      %s17 = ssub.s32 %s12, 1
      %s18 = ssub.s32 %s12, 2
      %s25 = sadd.s32 1, %s20
      %p26 = scmp.ge.s32.totalorder %s25, 2
      %s27 = scalar_select %p26, 0, %s25
      %s28 = sadd.s32 1, %s19
      %s29 = scalar_select %p26, %s28, %s19
      %p30 = scmp.ge.s32.totalorder %s29, 2
      %s31 = scalar_select %p30, 0, %s29
      %s32 = ssub.s32 %s19, %s31
      %s33 = ssub.s32 %s20, %s27
      %s34 = sor.u32 %s32, %s33
      %p35 = scmp.eq.s32.totalorder %s34, 0
      %s37 = sadd.s32 %s36, 1
      %s38 = scalar_select %p35, %s36, %s37
      %p41 = pneg %p35
      %p42 = scmp.eq.s32.totalorder %s12, 3
      %p43 = por %p41, %p42
      %p44 = scmp.ne.s32.totalorder %s36, %s39
      %p45 = scmp.eq.s32.totalorder %s12, 0
      %p46 = por %p44, %p45
      %p47 = scmp.ne.s32.totalorder %s36, %s39
      %p48 = scmp.eq.s32.totalorder %s17, 3
      %p49 = por %p47, %p48
      %p50 = scmp.ne.s32.totalorder %s39, %s40
      %p51 = scmp.eq.s32.totalorder %s17, 0
      %p52 = por %p50, %p51
      %p53 = scmp.ne.s32.totalorder %s39, %s40
      %p54 = scmp.eq.s32.totalorder %s18, 3
      %p55 = por %p53, %p54
      %p57 = scmp.ne.s32.totalorder %s40, %s56
      %p58 = scmp.eq.s32.totalorder %s18, 0
      %p59 = por %p57, %p58
      %s61 = sadd.s32 %s60, 1
      %p64 = scmp.eq.s32.totalorder %s12, 3
      %p65 = scmp.ne.s32.totalorder %s60, %s62
      %p66 = scmp.eq.s32.totalorder %s12, 0
      %p67 = por %p65, %p66
      %p68 = scmp.ne.s32.totalorder %s60, %s62
      %p69 = scmp.eq.s32.totalorder %s17, 3
      %p70 = por %p68, %p69
      %p71 = scmp.ne.s32.totalorder %s62, %s63
      %p72 = scmp.eq.s32.totalorder %s17, 0
      %p73 = por %p71, %p72
      %p74 = scmp.ne.s32.totalorder %s62, %s63
      %p75 = scmp.eq.s32.totalorder %s18, 3
      %p76 = por %p74, %p75
      %p78 = scmp.ne.s32.totalorder %s63, %s77
      %p79 = scmp.eq.s32.totalorder %s18, 0
      %p80 = por %p78, %p79
      %s82 = sadd.s32 %s81, 1
      %p85 = scmp.eq.s32.totalorder %s12, 3
      %p86 = scmp.ne.s32.totalorder %s81, %s83
      %p87 = scmp.eq.s32.totalorder %s12, 0
      %p88 = por %p86, %p87
      %p89 = scmp.ne.s32.totalorder %s81, %s83
      %p90 = scmp.eq.s32.totalorder %s17, 3
      %p91 = por %p89, %p90
      %p92 = scmp.ne.s32.totalorder %s83, %s84
      %p93 = scmp.eq.s32.totalorder %s17, 0
      %p94 = por %p92, %p93
      %p95 = scmp.ne.s32.totalorder %s83, %s84
      %p96 = scmp.eq.s32.totalorder %s18, 3
      %p97 = por %p95, %p96
      %p99 = scmp.ne.s32.totalorder %s84, %s98
      %p100 = scmp.eq.s32.totalorder %s18, 0
      %p101 = por %p99, %p100
      %s102 = ssub.s32 %s19, %s31
      %s103 = ssub.s32 %s20, %s27
      %s104 = sor.u32 %s102, %s103
      %p105 = scmp.eq.s32.totalorder %s104, 0
      %s107 = sadd.s32 %s106, 1
      %s108 = scalar_select %p105, %s106, %s107
      %p111 = pneg %p105
      %p112 = scmp.eq.s32.totalorder %s12, 3
      %p113 = por %p111, %p112
      %p114 = scmp.ne.s32.totalorder %s106, %s109
      %p115 = scmp.eq.s32.totalorder %s12, 0
      %p116 = por %p114, %p115
      %p117 = scmp.ne.s32.totalorder %s106, %s109
      %p118 = scmp.eq.s32.totalorder %s17, 3
      %p119 = por %p117, %p118
      %p120 = scmp.ne.s32.totalorder %s109, %s110
      %p121 = scmp.eq.s32.totalorder %s17, 0
      %p122 = por %p120, %p121
      %p123 = scmp.ne.s32.totalorder %s109, %s110
      %p124 = scmp.eq.s32.totalorder %s18, 3
      %p125 = por %p123, %p124
      %p127 = scmp.ne.s32.totalorder %s110, %s126
      %p128 = scmp.eq.s32.totalorder %s18, 0
      %p129 = por %p127, %p128
      %p130 = scmp.le.s32.totalorder 1, %s12
      %p131 = scmp.lt.s32.totalorder %s12, 5
      %p132 = pnand %p130, %p131
      %p133 = pneg %p132
      // Predicated region
      $region9: #{tpu_custom_call.1} parent=5 // pred_check
        _
      $region10: #{tpu_custom_call.1} parent=5 // pred_check_branch
        %135 = sbr.rel (%p132) target = $region12
      $region11: #{tpu_custom_call.1} parent=5 // pred_region
        %s136 = ssub.s32 %s12, 1
        // Predicated region
        $region13: #{tpu_custom_call.1} parent=11 // pred_check
          %p137 = pneg %p73
        $region14: #{tpu_custom_call.1} parent=11 // pred_check_branch
          %139 = sbr.rel (%p137) target = $region16
        $region15: #{tpu_custom_call.1} parent=11 // pred_region
          _
        $region16: #{tpu_custom_call.1} parent=11 // pred_fallthru
          _
        // Predicated region
        $region17: #{tpu_custom_call.1} parent=11 // pred_check
          %p140 = pneg %p94
        $region18: #{tpu_custom_call.1} parent=11 // pred_check_branch
          %142 = sbr.rel (%p140) target = $region20
        $region19: #{tpu_custom_call.1} parent=11 // pred_region
          _
        $region20: #{tpu_custom_call.1} parent=11 // pred_fallthru
          _
      $region12: #{tpu_custom_call.1} parent=5 // pred_fallthru
        _
      %p143 = scmp.lt.s32.totalorder %s12, 4
      // Predicated region
      $region21: #{tpu_custom_call.1} parent=5 // pred_check
        %p144 = pneg %p143
      $region22: #{tpu_custom_call.1} parent=5 // pred_check_branch
        %146 = sbr.rel (%p144) target = $region24
      $region23: #{tpu_custom_call.1} parent=5 // pred_region
        // Predicated region
        $region25: #{tpu_custom_call.1} parent=23 // pred_check
          %p147 = pneg %p46
        $region26: #{tpu_custom_call.1} parent=23 // pred_check_branch
          %149 = sbr.rel (%p147) target = $region28
        $region27: #{tpu_custom_call.1} parent=23 // pred_region
          %p150 = scmp.lt.s32.totalorder %s19, 1
          %s151 = scalar_select %p150, %s19, 1
          %p152 = scmp.lt.s32.totalorder %s20, 1
          %s153 = scalar_select %p152, %s20, 1
          %s154 = smul.addr %s153, 30
          %s155 = smul.addr %s151, 60
          %s156 = sadd.s32 %s154, %s155
          %s157 = smul.addr %s156, 8
          %s158 = scalar_lea.vmem %s0, %s157
        $region28: #{tpu_custom_call.1} parent=23 // pred_fallthru
          _
      $region24: #{tpu_custom_call.1} parent=5 // pred_fallthru
        _
      %p159 = scmp.le.s32.totalorder 1, %s12
      %p160 = scmp.lt.s32.totalorder %s12, 5
      %p161 = pnand %p159, %p160
      %p162 = pneg %p161
      // Predicated region
      $region29: #{tpu_custom_call.1} parent=5 // pred_check
        _
      $region30: #{tpu_custom_call.1} parent=5 // pred_check_branch
        %164 = sbr.rel (%p161) target = $region32
      $region31: #{tpu_custom_call.1} parent=5 // pred_region
        %s165 = ssub.s32 %s12, 1
        %p166 = scmp.lt.s32.totalorder %s21, 1
        %s167 = scalar_select %p166, %s21, 1
        %p168 = scmp.lt.s32.totalorder %s22, 1
        %s169 = scalar_select %p168, %s22, 1
        %s170 = smul.addr %s169, 30
        %s171 = smul.addr %s167, 60
        %s172 = sadd.s32 %s170, %s171
        %s173 = smul.addr %s172, 8
        %s174 = scalar_lea.vmem %s0, %s173
        %p175 = pneg %p52
        %p176 = pneg %p49
        %p177 = pneg %p73
        %p178 = pneg %p70
        %p179 = pneg %p94
        %p180 = pneg %p91
        %p181 = pneg %p122
        %p182 = pneg %p119
        %s183 = sand.u32 %s109, 1
        %s184 = scalar_lea.sflag [#allocation3], %s183
        %s185 = sand.u32 %s109, 1
        %s186 = smul.addr %s185, 128
        %s187 = scalar_lea.vmem [#allocation2], %s186
        %p188 = scmp.lt.s32.totalorder %s21, 1
        %s189 = scalar_select %p188, %s21, 1
        %p190 = scmp.lt.s32.totalorder %s22, 1
        %s191 = scalar_select %p190, %s22, 1
        %s192 = smul.addr %s191, 30
        %s193 = smul.addr %s189, 60
        %s194 = sadd.s32 %s192, %s193
        %s195 = smul.addr %s194, 8
        %s196 = scalar_lea.vmem %s0, %s195
        %s197 = smul.u32 8, %s22
        %v199 = vld [vmem:[%s196] sm:$0xff]
        %v200 = vld [vmem:[%s196 + $0x8] sm:$0xff]
        %v201 = vld [vmem:[%s196 + $0x10] sm:$0x3]
        %v202 = vld [vmem:[%s196 + $0x18] sm:$0xff]
        %v203 = vld [vmem:[%s196 + $0x20] sm:$0xff]
        %v204 = vld [vmem:[%s196 + $0x28] sm:$0x3]
        %v205 = vld [vmem:[%s196 + $0x30] sm:$0xff]
        %v206 = vld [vmem:[%s196 + $0x38] sm:$0xff]
        %v207 = vld [vmem:[%s196 + $0x40] sm:$0x3]
        %v208 = vld [vmem:[%s196 + $0x48] sm:$0xff]
        %v209 = vld [vmem:[%s196 + $0x50] sm:$0xff]
        %v210 = vld [vmem:[%s196 + $0x58] sm:$0x3]
        %v211 = vld [vmem:[%s196 + $0x60] sm:$0xff]
        %v212 = vld [vmem:[%s196 + $0x68] sm:$0xff]
        %v213 = vld [vmem:[%s196 + $0x70] sm:$0x3]
        %v214 = vld [vmem:[%s196 + $0x78] sm:$0xff]
        %v215 = vld [vmem:[%s196 + $0x80] sm:$0xff]
        %v216 = vld [vmem:[%s196 + $0x88] sm:$0x3]
        %v217 = vld [vmem:[%s196 + $0x90] sm:$0xff]
        %v218 = vld [vmem:[%s196 + $0x98] sm:$0xff]
        %v219 = vld [vmem:[%s196 + $0xa0] sm:$0x3]
        %v220 = vld [vmem:[%s196 + $0xa8] sm:$0xff]
        %v221 = vld [vmem:[%s196 + $0xb0] sm:$0xff]
        %v222 = vld [vmem:[%s196 + $0xb8] sm:$0x3]
        %v223 = vld [vmem:[%s196 + $0xc0] sm:$0xff]
        %v224 = vld [vmem:[%s196 + $0xc8] sm:$0xff]
        %v225 = vld [vmem:[%s196 + $0xd0] sm:$0x3]
        %v226 = vld [vmem:[%s196 + $0xd8] sm:$0xff]
        %v227 = vld [vmem:[%s196 + $0xe0] sm:$0xff]
        %v228 = vld [vmem:[%s196 + $0xe8] sm:$0x3]
        %vm253 = vcmask 1046528
        %v254 = vrot.slane %v199, 1
        %v255 = vrot.slane %v200, 1
        %v256 = vsel %vm253, %v254, %v255
        %v257 = vrot.slane %v201, 1
        %v258 = vsel %vm253, %v255, %v257
        %v259 = vrot.slane %v202, 1
        %v260 = vrot.slane %v203, 1
        %v261 = vsel %vm253, %v259, %v260
        %v262 = vrot.slane %v204, 1
        %v263 = vsel %vm253, %v260, %v262
        %v264 = vrot.slane %v205, 1
        %v265 = vrot.slane %v206, 1
        %v266 = vsel %vm253, %v264, %v265
        %v267 = vrot.slane %v207, 1
        %v268 = vsel %vm253, %v265, %v267
        %v269 = vrot.slane %v208, 1
        %v270 = vrot.slane %v209, 1
        %v271 = vsel %vm253, %v269, %v270
        %v272 = vrot.slane %v210, 1
        %v273 = vsel %vm253, %v270, %v272
        %v274 = vrot.slane %v211, 1
        %v275 = vrot.slane %v212, 1
        %v276 = vsel %vm253, %v274, %v275
        %v277 = vrot.slane %v213, 1
        %v278 = vsel %vm253, %v275, %v277
        %v279 = vrot.slane %v214, 1
        %v280 = vrot.slane %v215, 1
        %v281 = vsel %vm253, %v279, %v280
        %v282 = vrot.slane %v216, 1
        %v283 = vsel %vm253, %v280, %v282
        %v284 = vrot.slane %v217, 1
        %v285 = vrot.slane %v218, 1
        %v286 = vsel %vm253, %v284, %v285
        %v287 = vrot.slane %v219, 1
        %v288 = vsel %vm253, %v285, %v287
        %v289 = vrot.slane %v220, 1
        %v290 = vrot.slane %v221, 1
        %v291 = vsel %vm253, %v289, %v290
        %v292 = vrot.slane %v222, 1
        %v293 = vsel %vm253, %v290, %v292
        %294 = vrot.lane.b32.xlu0 %v256, 4
        %v295 = vpop.permute.xlu0 %294
        %296 = vrot.lane.b32.xlu0 %v258, 4
        %v297 = vpop.permute.xlu0 %296
        %298 = vrot.lane.b32.xlu0 %v261, 4
        %v299 = vpop.permute.xlu0 %298
        %300 = vrot.lane.b32.xlu0 %v263, 4
        %v301 = vpop.permute.xlu0 %300
        %302 = vrot.lane.b32.xlu0 %v266, 4
        %v303 = vpop.permute.xlu0 %302
        %304 = vrot.lane.b32.xlu0 %v268, 4
        %v305 = vpop.permute.xlu0 %304
        %306 = vrot.lane.b32.xlu0 %v271, 4
        %v307 = vpop.permute.xlu0 %306
        %308 = vrot.lane.b32.xlu0 %v273, 4
        %v309 = vpop.permute.xlu0 %308
        %310 = vrot.lane.b32.xlu0 %v276, 4
        %v311 = vpop.permute.xlu0 %310
        %312 = vrot.lane.b32.xlu0 %v278, 4
        %v313 = vpop.permute.xlu0 %312
        %314 = vrot.lane.b32.xlu0 %v281, 4
        %v315 = vpop.permute.xlu0 %314
        %316 = vrot.lane.b32.xlu0 %v283, 4
        %v317 = vpop.permute.xlu0 %316
        %318 = vrot.lane.b32.xlu0 %v286, 4
        %v319 = vpop.permute.xlu0 %318
        %320 = vrot.lane.b32.xlu0 %v288, 4
        %v321 = vpop.permute.xlu0 %320
        %322 = vrot.lane.b32.xlu0 %v291, 4
        %v323 = vpop.permute.xlu0 %322
        %324 = vrot.lane.b32.xlu0 %v293, 4
        %v325 = vpop.permute.xlu0 %324
        %vm342 = vcmask 1045504
        %v343 = vrot.slane %v199, 2
        %v344 = vrot.slane %v200, 2
        %v345 = vsel %vm342, %v343, %v344
        %v346 = vrot.slane %v201, 2
        %v347 = vsel %vm342, %v344, %v346
        %v348 = vrot.slane %v202, 2
        %v349 = vrot.slane %v203, 2
        %v350 = vsel %vm342, %v348, %v349
        %v351 = vrot.slane %v204, 2
        %v352 = vsel %vm342, %v349, %v351
        %v353 = vrot.slane %v205, 2
        %v354 = vrot.slane %v206, 2
        %v355 = vsel %vm342, %v353, %v354
        %v356 = vrot.slane %v207, 2
        %v357 = vsel %vm342, %v354, %v356
        %v358 = vrot.slane %v208, 2
        %v359 = vrot.slane %v209, 2
        %v360 = vsel %vm342, %v358, %v359
        %v361 = vrot.slane %v210, 2
        %v362 = vsel %vm342, %v359, %v361
        %v363 = vrot.slane %v211, 2
        %v364 = vrot.slane %v212, 2
        %v365 = vsel %vm342, %v363, %v364
        %v366 = vrot.slane %v213, 2
        %v367 = vsel %vm342, %v364, %v366
        %v368 = vrot.slane %v214, 2
        %v369 = vrot.slane %v215, 2
        %v370 = vsel %vm342, %v368, %v369
        %v371 = vrot.slane %v216, 2
        %v372 = vsel %vm342, %v369, %v371
        %v373 = vrot.slane %v217, 2
        %v374 = vrot.slane %v218, 2
        %v375 = vsel %vm342, %v373, %v374
        %v376 = vrot.slane %v219, 2
        %v377 = vsel %vm342, %v374, %v376
        %v378 = vrot.slane %v220, 2
        %v379 = vrot.slane %v221, 2
        %v380 = vsel %vm342, %v378, %v379
        %v381 = vrot.slane %v222, 2
        %v382 = vsel %vm342, %v379, %v381
        %383 = vrot.lane.b32.xlu0 %v345, 8
        %v384 = vpop.permute.xlu0 %383
        %385 = vrot.lane.b32.xlu0 %v347, 8
        %v386 = vpop.permute.xlu0 %385
        %387 = vrot.lane.b32.xlu0 %v350, 8
        %v388 = vpop.permute.xlu0 %387
        %389 = vrot.lane.b32.xlu0 %v352, 8
        %v390 = vpop.permute.xlu0 %389
        %391 = vrot.lane.b32.xlu0 %v355, 8
        %v392 = vpop.permute.xlu0 %391
        %393 = vrot.lane.b32.xlu0 %v357, 8
        %v394 = vpop.permute.xlu0 %393
        %395 = vrot.lane.b32.xlu0 %v360, 8
        %v396 = vpop.permute.xlu0 %395
        %397 = vrot.lane.b32.xlu0 %v362, 8
        %v398 = vpop.permute.xlu0 %397
        %399 = vrot.lane.b32.xlu0 %v365, 8
        %v400 = vpop.permute.xlu0 %399
        %401 = vrot.lane.b32.xlu0 %v367, 8
        %v402 = vpop.permute.xlu0 %401
        %403 = vrot.lane.b32.xlu0 %v370, 8
        %v404 = vpop.permute.xlu0 %403
        %405 = vrot.lane.b32.xlu0 %v372, 8
        %v406 = vpop.permute.xlu0 %405
        %407 = vrot.lane.b32.xlu0 %v375, 8
        %v408 = vpop.permute.xlu0 %407
        %409 = vrot.lane.b32.xlu0 %v377, 8
        %v410 = vpop.permute.xlu0 %409
        %411 = vrot.lane.b32.xlu0 %v380, 8
        %v412 = vpop.permute.xlu0 %411
        %413 = vrot.lane.b32.xlu0 %v382, 8
        %v414 = vpop.permute.xlu0 %413
        %433 = vrot.lane.b32.xlu0 %v202, 12
        %v434 = vpop.permute.xlu0 %433
        %435 = vrot.lane.b32.xlu0 %v203, 12
        %v436 = vpop.permute.xlu0 %435
        %437 = vrot.lane.b32.xlu0 %v205, 12
        %v438 = vpop.permute.xlu0 %437
        %439 = vrot.lane.b32.xlu0 %v206, 12
        %v440 = vpop.permute.xlu0 %439
        %441 = vrot.lane.b32.xlu0 %v208, 12
        %v442 = vpop.permute.xlu0 %441
        %443 = vrot.lane.b32.xlu0 %v209, 12
        %v444 = vpop.permute.xlu0 %443
        %445 = vrot.lane.b32.xlu0 %v211, 12
        %v446 = vpop.permute.xlu0 %445
        %447 = vrot.lane.b32.xlu0 %v212, 12
        %v448 = vpop.permute.xlu0 %447
        %449 = vrot.lane.b32.xlu0 %v214, 12
        %v450 = vpop.permute.xlu0 %449
        %451 = vrot.lane.b32.xlu0 %v215, 12
        %v452 = vpop.permute.xlu0 %451
        %453 = vrot.lane.b32.xlu0 %v217, 12
        %v454 = vpop.permute.xlu0 %453
        %455 = vrot.lane.b32.xlu0 %v218, 12
        %v456 = vpop.permute.xlu0 %455
        %457 = vrot.lane.b32.xlu0 %v220, 12
        %v458 = vpop.permute.xlu0 %457
        %459 = vrot.lane.b32.xlu0 %v221, 12
        %v460 = vpop.permute.xlu0 %459
        %461 = vrot.lane.b32.xlu0 %v223, 12
        %v462 = vpop.permute.xlu0 %461
        %463 = vrot.lane.b32.xlu0 %v224, 12
        %v464 = vpop.permute.xlu0 %463
        %v482 = vrot.slane %v223, 1
        %v483 = vrot.slane %v224, 1
        %v484 = vsel %vm253, %v482, %v483
        %v485 = vrot.slane %v225, 1
        %v486 = vsel %vm253, %v483, %v485
        %487 = vrot.lane.b32.xlu0 %v261, 16
        %v488 = vpop.permute.xlu0 %487
        %489 = vrot.lane.b32.xlu0 %v263, 16
        %v490 = vpop.permute.xlu0 %489
        %491 = vrot.lane.b32.xlu0 %v266, 16
        %v492 = vpop.permute.xlu0 %491
        %493 = vrot.lane.b32.xlu0 %v268, 16
        %v494 = vpop.permute.xlu0 %493
        %495 = vrot.lane.b32.xlu0 %v271, 16
        %v496 = vpop.permute.xlu0 %495
        %497 = vrot.lane.b32.xlu0 %v273, 16
        %v498 = vpop.permute.xlu0 %497
        %499 = vrot.lane.b32.xlu0 %v276, 16
        %v500 = vpop.permute.xlu0 %499
        %501 = vrot.lane.b32.xlu0 %v278, 16
        %v502 = vpop.permute.xlu0 %501
        %503 = vrot.lane.b32.xlu0 %v281, 16
        %v504 = vpop.permute.xlu0 %503
        %505 = vrot.lane.b32.xlu0 %v283, 16
        %v506 = vpop.permute.xlu0 %505
        %507 = vrot.lane.b32.xlu0 %v286, 16
        %v508 = vpop.permute.xlu0 %507
        %509 = vrot.lane.b32.xlu0 %v288, 16
        %v510 = vpop.permute.xlu0 %509
        %511 = vrot.lane.b32.xlu0 %v291, 16
        %v512 = vpop.permute.xlu0 %511
        %513 = vrot.lane.b32.xlu0 %v293, 16
        %v514 = vpop.permute.xlu0 %513
        %515 = vrot.lane.b32.xlu0 %v484, 16
        %v516 = vpop.permute.xlu0 %515
        %517 = vrot.lane.b32.xlu0 %v486, 16
        %v518 = vpop.permute.xlu0 %517
        %v535 = vrot.slane %v223, 2
        %v536 = vrot.slane %v224, 2
        %v537 = vsel %vm342, %v535, %v536
        %v538 = vrot.slane %v225, 2
        %v539 = vsel %vm342, %v536, %v538
        %540 = vrot.lane.b32.xlu0 %v350, 20
        %v541 = vpop.permute.xlu0 %540
        %542 = vrot.lane.b32.xlu0 %v352, 20
        %v543 = vpop.permute.xlu0 %542
        %544 = vrot.lane.b32.xlu0 %v355, 20
        %v545 = vpop.permute.xlu0 %544
        %546 = vrot.lane.b32.xlu0 %v357, 20
        %v547 = vpop.permute.xlu0 %546
        %548 = vrot.lane.b32.xlu0 %v360, 20
        %v549 = vpop.permute.xlu0 %548
        %550 = vrot.lane.b32.xlu0 %v362, 20
        %v551 = vpop.permute.xlu0 %550
        %552 = vrot.lane.b32.xlu0 %v365, 20
        %v553 = vpop.permute.xlu0 %552
        %554 = vrot.lane.b32.xlu0 %v367, 20
        %v555 = vpop.permute.xlu0 %554
        %556 = vrot.lane.b32.xlu0 %v370, 20
        %v557 = vpop.permute.xlu0 %556
        %558 = vrot.lane.b32.xlu0 %v372, 20
        %v559 = vpop.permute.xlu0 %558
        %560 = vrot.lane.b32.xlu0 %v375, 20
        %v561 = vpop.permute.xlu0 %560
        %562 = vrot.lane.b32.xlu0 %v377, 20
        %v563 = vpop.permute.xlu0 %562
        %564 = vrot.lane.b32.xlu0 %v380, 20
        %v565 = vpop.permute.xlu0 %564
        %566 = vrot.lane.b32.xlu0 %v382, 20
        %v567 = vpop.permute.xlu0 %566
        %568 = vrot.lane.b32.xlu0 %v537, 20
        %v569 = vpop.permute.xlu0 %568
        %570 = vrot.lane.b32.xlu0 %v539, 20
        %v571 = vpop.permute.xlu0 %570
        %590 = vrot.lane.b32.xlu0 %v205, 24
        %v591 = vpop.permute.xlu0 %590
        %592 = vrot.lane.b32.xlu0 %v206, 24
        %v593 = vpop.permute.xlu0 %592
        %594 = vrot.lane.b32.xlu0 %v208, 24
        %v595 = vpop.permute.xlu0 %594
        %596 = vrot.lane.b32.xlu0 %v209, 24
        %v597 = vpop.permute.xlu0 %596
        %598 = vrot.lane.b32.xlu0 %v211, 24
        %v599 = vpop.permute.xlu0 %598
        %600 = vrot.lane.b32.xlu0 %v212, 24
        %v601 = vpop.permute.xlu0 %600
        %602 = vrot.lane.b32.xlu0 %v214, 24
        %v603 = vpop.permute.xlu0 %602
        %604 = vrot.lane.b32.xlu0 %v215, 24
        %v605 = vpop.permute.xlu0 %604
        %606 = vrot.lane.b32.xlu0 %v217, 24
        %v607 = vpop.permute.xlu0 %606
        %608 = vrot.lane.b32.xlu0 %v218, 24
        %v609 = vpop.permute.xlu0 %608
        %610 = vrot.lane.b32.xlu0 %v220, 24
        %v611 = vpop.permute.xlu0 %610
        %612 = vrot.lane.b32.xlu0 %v221, 24
        %v613 = vpop.permute.xlu0 %612
        %614 = vrot.lane.b32.xlu0 %v223, 24
        %v615 = vpop.permute.xlu0 %614
        %616 = vrot.lane.b32.xlu0 %v224, 24
        %v617 = vpop.permute.xlu0 %616
        %618 = vrot.lane.b32.xlu0 %v226, 24
        %v619 = vpop.permute.xlu0 %618
        %620 = vrot.lane.b32.xlu0 %v227, 24
        %v621 = vpop.permute.xlu0 %620
        %v639 = vrot.slane %v226, 1
        %v640 = vrot.slane %v227, 1
        %v641 = vsel %vm253, %v639, %v640
        %v642 = vrot.slane %v228, 1
        %v643 = vsel %vm253, %v640, %v642
        %644 = vrot.lane.b32.xlu0 %v266, 28
        %v645 = vpop.permute.xlu0 %644
        %646 = vrot.lane.b32.xlu0 %v268, 28
        %v647 = vpop.permute.xlu0 %646
        %648 = vrot.lane.b32.xlu0 %v271, 28
        %v649 = vpop.permute.xlu0 %648
        %650 = vrot.lane.b32.xlu0 %v273, 28
        %v651 = vpop.permute.xlu0 %650
        %652 = vrot.lane.b32.xlu0 %v276, 28
        %v653 = vpop.permute.xlu0 %652
        %654 = vrot.lane.b32.xlu0 %v278, 28
        %v655 = vpop.permute.xlu0 %654
        %656 = vrot.lane.b32.xlu0 %v281, 28
        %v657 = vpop.permute.xlu0 %656
        %658 = vrot.lane.b32.xlu0 %v283, 28
        %v659 = vpop.permute.xlu0 %658
        %660 = vrot.lane.b32.xlu0 %v286, 28
        %v661 = vpop.permute.xlu0 %660
        %662 = vrot.lane.b32.xlu0 %v288, 28
        %v663 = vpop.permute.xlu0 %662
        %664 = vrot.lane.b32.xlu0 %v291, 28
        %v665 = vpop.permute.xlu0 %664
        %666 = vrot.lane.b32.xlu0 %v293, 28
        %v667 = vpop.permute.xlu0 %666
        %668 = vrot.lane.b32.xlu0 %v484, 28
        %v669 = vpop.permute.xlu0 %668
        %670 = vrot.lane.b32.xlu0 %v486, 28
        %v671 = vpop.permute.xlu0 %670
        %672 = vrot.lane.b32.xlu0 %v641, 28
        %v673 = vpop.permute.xlu0 %672
        %674 = vrot.lane.b32.xlu0 %v643, 28
        %v675 = vpop.permute.xlu0 %674
        %v692 = vrot.slane %v226, 2
        %v693 = vrot.slane %v227, 2
        %v694 = vsel %vm342, %v692, %v693
        %v695 = vrot.slane %v228, 2
        %v696 = vsel %vm342, %v693, %v695
        %697 = vrot.lane.b32.xlu0 %v355, 32
        %v698 = vpop.permute.xlu0 %697
        %699 = vrot.lane.b32.xlu0 %v357, 32
        %v700 = vpop.permute.xlu0 %699
        %701 = vrot.lane.b32.xlu0 %v360, 32
        %v702 = vpop.permute.xlu0 %701
        %703 = vrot.lane.b32.xlu0 %v362, 32
        %v704 = vpop.permute.xlu0 %703
        %705 = vrot.lane.b32.xlu0 %v365, 32
        %v706 = vpop.permute.xlu0 %705
        %707 = vrot.lane.b32.xlu0 %v367, 32
        %v708 = vpop.permute.xlu0 %707
        %709 = vrot.lane.b32.xlu0 %v370, 32
        %v710 = vpop.permute.xlu0 %709
        %711 = vrot.lane.b32.xlu0 %v372, 32
        %v712 = vpop.permute.xlu0 %711
        %713 = vrot.lane.b32.xlu0 %v375, 32
        %v714 = vpop.permute.xlu0 %713
        %715 = vrot.lane.b32.xlu0 %v377, 32
        %v716 = vpop.permute.xlu0 %715
        %717 = vrot.lane.b32.xlu0 %v380, 32
        %v718 = vpop.permute.xlu0 %717
        %719 = vrot.lane.b32.xlu0 %v382, 32
        %v720 = vpop.permute.xlu0 %719
        %721 = vrot.lane.b32.xlu0 %v537, 32
        %v722 = vpop.permute.xlu0 %721
        %723 = vrot.lane.b32.xlu0 %v539, 32
        %v724 = vpop.permute.xlu0 %723
        %725 = vrot.lane.b32.xlu0 %v694, 32
        %v726 = vpop.permute.xlu0 %725
        %727 = vrot.lane.b32.xlu0 %v696, 32
        %v728 = vpop.permute.xlu0 %727
        %vm745 = vcmask 31744
        %v746 = vsel %vm745, %v199, %v295
        %v747 = vsel %vm745, %v200, %v297
        %v748 = vsel %vm745, %v202, %v299
        %v749 = vsel %vm745, %v203, %v301
        %v750 = vsel %vm745, %v205, %v303
        %v751 = vsel %vm745, %v206, %v305
        %v752 = vsel %vm745, %v208, %v307
        %v753 = vsel %vm745, %v209, %v309
        %v754 = vsel %vm745, %v211, %v311
        %v755 = vsel %vm745, %v212, %v313
        %v756 = vsel %vm745, %v214, %v315
        %v757 = vsel %vm745, %v215, %v317
        %v758 = vsel %vm745, %v217, %v319
        %v759 = vsel %vm745, %v218, %v321
        %v760 = vsel %vm745, %v220, %v323
        %v761 = vsel %vm745, %v221, %v325
        %vm762 = vcmask 64512
        %v763 = vsel %vm762, %v746, %v384
        %v764 = vsel %vm762, %v747, %v386
        %v765 = vsel %vm762, %v748, %v388
        %v766 = vsel %vm762, %v749, %v390
        %v767 = vsel %vm762, %v750, %v392
        %v768 = vsel %vm762, %v751, %v394
        %v769 = vsel %vm762, %v752, %v396
        %v770 = vsel %vm762, %v753, %v398
        %v771 = vsel %vm762, %v754, %v400
        %v772 = vsel %vm762, %v755, %v402
        %v773 = vsel %vm762, %v756, %v404
        %v774 = vsel %vm762, %v757, %v406
        %v775 = vsel %vm762, %v758, %v408
        %v776 = vsel %vm762, %v759, %v410
        %v777 = vsel %vm762, %v760, %v412
        %v778 = vsel %vm762, %v761, %v414
        %vm779 = vcmask 97280
        %v780 = vsel %vm779, %v763, %v434
        %v781 = vsel %vm779, %v764, %v436
        %v782 = vsel %vm779, %v765, %v438
        %v783 = vsel %vm779, %v766, %v440
        %v784 = vsel %vm779, %v767, %v442
        %v785 = vsel %vm779, %v768, %v444
        %v786 = vsel %vm779, %v769, %v446
        %v787 = vsel %vm779, %v770, %v448
        %v788 = vsel %vm779, %v771, %v450
        %v789 = vsel %vm779, %v772, %v452
        %v790 = vsel %vm779, %v773, %v454
        %v791 = vsel %vm779, %v774, %v456
        %v792 = vsel %vm779, %v775, %v458
        %v793 = vsel %vm779, %v776, %v460
        %v794 = vsel %vm779, %v777, %v462
        %v795 = vsel %vm779, %v778, %v464
        %vm796 = vcmask 130048
        %v797 = vsel %vm796, %v780, %v488
        %v798 = vsel %vm796, %v781, %v490
        %v799 = vsel %vm796, %v782, %v492
        %v800 = vsel %vm796, %v783, %v494
        %v801 = vsel %vm796, %v784, %v496
        %v802 = vsel %vm796, %v785, %v498
        %v803 = vsel %vm796, %v786, %v500
        %v804 = vsel %vm796, %v787, %v502
        %v805 = vsel %vm796, %v788, %v504
        %v806 = vsel %vm796, %v789, %v506
        %v807 = vsel %vm796, %v790, %v508
        %v808 = vsel %vm796, %v791, %v510
        %v809 = vsel %vm796, %v792, %v512
        %v810 = vsel %vm796, %v793, %v514
        %v811 = vsel %vm796, %v794, %v516
        %v812 = vsel %vm796, %v795, %v518
        %vm813 = vcmask 162816
        %v814 = vsel %vm813, %v797, %v541
        %v815 = vsel %vm813, %v798, %v543
        %v816 = vsel %vm813, %v799, %v545
        %v817 = vsel %vm813, %v800, %v547
        %v818 = vsel %vm813, %v801, %v549
        %v819 = vsel %vm813, %v802, %v551
        %v820 = vsel %vm813, %v803, %v553
        %v821 = vsel %vm813, %v804, %v555
        %v822 = vsel %vm813, %v805, %v557
        %v823 = vsel %vm813, %v806, %v559
        %v824 = vsel %vm813, %v807, %v561
        %v825 = vsel %vm813, %v808, %v563
        %v826 = vsel %vm813, %v809, %v565
        %v827 = vsel %vm813, %v810, %v567
        %v828 = vsel %vm813, %v811, %v569
        %v829 = vsel %vm813, %v812, %v571
        %vm830 = vcmask 195584
        %v831 = vsel %vm830, %v814, %v591
        %v832 = vsel %vm830, %v815, %v593
        %v833 = vsel %vm830, %v816, %v595
        %v834 = vsel %vm830, %v817, %v597
        %v835 = vsel %vm830, %v818, %v599
        %v836 = vsel %vm830, %v819, %v601
        %v837 = vsel %vm830, %v820, %v603
        %v838 = vsel %vm830, %v821, %v605
        %v839 = vsel %vm830, %v822, %v607
        %v840 = vsel %vm830, %v823, %v609
        %v841 = vsel %vm830, %v824, %v611
        %v842 = vsel %vm830, %v825, %v613
        %v843 = vsel %vm830, %v826, %v615
        %v844 = vsel %vm830, %v827, %v617
        %v845 = vsel %vm830, %v828, %v619
        %v846 = vsel %vm830, %v829, %v621
        %vm847 = vcmask 228352
        %v848 = vsel %vm847, %v831, %v645
        %v849 = vsel %vm847, %v832, %v647
        %v850 = vsel %vm847, %v833, %v649
        %v851 = vsel %vm847, %v834, %v651
        %v852 = vsel %vm847, %v835, %v653
        %v853 = vsel %vm847, %v836, %v655
        %v854 = vsel %vm847, %v837, %v657
        %v855 = vsel %vm847, %v838, %v659
        %v856 = vsel %vm847, %v839, %v661
        %v857 = vsel %vm847, %v840, %v663
        %v858 = vsel %vm847, %v841, %v665
        %v859 = vsel %vm847, %v842, %v667
        %v860 = vsel %vm847, %v843, %v669
        %v861 = vsel %vm847, %v844, %v671
        %v862 = vsel %vm847, %v845, %v673
        %v863 = vsel %vm847, %v846, %v675
        %vm864 = vcmask 261120
        %v865 = vsel %vm864, %v848, %v698
        %v866 = vsel %vm864, %v849, %v700
        %v867 = vsel %vm864, %v850, %v702
        %v868 = vsel %vm864, %v851, %v704
        %v869 = vsel %vm864, %v852, %v706
        %v870 = vsel %vm864, %v853, %v708
        %v871 = vsel %vm864, %v854, %v710
        %v872 = vsel %vm864, %v855, %v712
        %v873 = vsel %vm864, %v856, %v714
        %v874 = vsel %vm864, %v857, %v716
        %v875 = vsel %vm864, %v858, %v718
        %v876 = vsel %vm864, %v859, %v720
        %v877 = vsel %vm864, %v860, %v722
        %v878 = vsel %vm864, %v861, %v724
        %v879 = vsel %vm864, %v862, %v726
        %v880 = vsel %vm864, %v863, %v728
        %v881 = vpack.c.bf16 %v866, %v865
        %v882 = vpack.c.bf16 %v868, %v867
        %v883 = vpack.c.bf16 %v870, %v869
        %v884 = vpack.c.bf16 %v872, %v871
        %v885 = vpack.c.bf16 %v874, %v873
        %v886 = vpack.c.bf16 %v876, %v875
        %v887 = vpack.c.bf16 %v878, %v877
        %v888 = vpack.c.bf16 %v880, %v879
        %v889 = vld [vmem:[%s1] sm:$0xf]
        %v890 = vld [vmem:[%s1 + $0x4] sm:$0xf]
        %v891 = vld [vmem:[%s1 + $0x8] sm:$0xf]
        %v892 = vld [vmem:[%s1 + $0xc] sm:$0xf]
        %v893 = vld [vmem:[%s1 + $0x10] sm:$0x3]
        %v894 = vld [vmem:[%s2] sm:$0x1]
        %v896 = vlaneseq
        %v897 = vshrl.u32 %v896, 7
        %v898 = vsub.s32 0, %v897
        %v899 = vrot.slane %v894, %v898
        %v906 = vunpack.c.l.b16 %v889
        %v907 = vunpack.c.l.b16 %v890
        %v908 = vunpack.c.l.b16 %v891
        %v909 = vunpack.c.l.b16 %v892
        %v910 = vunpack.c.l.b16 %v893
        %v911 = vpack.c.b16 %v907, %v906
        %v912 = vpack.c.b16 %v909, %v908
        %v913 = vpack.c.b16 %v910, %v910
        %vm916 = vcmask 293888
        %v918 = vsel %vm916, %v881, 0
        %v921 = vsel %vm916, %v882, 0
        %v924 = vsel %vm916, %v883, 0
        %v927 = vsel %vm916, %v884, 0
        %v930 = vsel %vm916, %v885, 0
        %v933 = vsel %vm916, %v886, 0
        %v936 = vsel %vm916, %v887, 0
        %v939 = vsel %vm916, %v888, 0
        %vm941 = vcmask 1041408
        %v943 = vsel %vm941, %v913, 0
        %945 = vmatprep.subr.bf16.mxu0 0
        %946 = vmatpush1.bf16.msra.mxu0 %v911
        %947 = vmatprep.subr.bf16.mxu0 0
        %948 = vmatpush1.bf16.msra.mxu0 %v912
        %949 = vmatprep.subr.bf16.mxu0 0
        %950 = vmatpush1.bf16.msra.mxu0 %v943
        %951 = vmatprep.subr.bf16.mxu0 0
        %952 = vmatpush1.bf16.msra.mxu0 0
        %953 = vmatprep.subr.bf16.mxu0 0
        %954 = vmatpush1.bf16.msra.mxu0 0
        %955 = vmatprep.subr.bf16.mxu0 0
        %956 = vmatpush1.bf16.msra.mxu0 0
        %957 = vmatprep.subr.bf16.mxu0 0
        %958 = vmatpush1.bf16.msra.mxu0 0
        %959 = vmatprep.subr.bf16.mxu0 0
        %960 = vmatpush1.bf16.msra.mxu0 0
        %961 = vmatprep.subr.bf16.mxu0 0
        %962 = vmatpush1.bf16.msra.mxu0 0
        %963 = vmatprep.subr.bf16.mxu0 0
        %964 = vmatpush1.bf16.msra.mxu0 0
        %965 = vmatprep.subr.bf16.mxu0 0
        %966 = vmatpush1.bf16.msra.mxu0 0
        %967 = vmatprep.subr.bf16.mxu0 0
        %968 = vmatpush1.bf16.msra.mxu0 0
        %969 = vmatprep.subr.bf16.mxu0 0
        %970 = vmatpush1.bf16.msra.mxu0 0
        %971 = vmatprep.subr.bf16.mxu0 0
        %972 = vmatpush1.bf16.msra.mxu0 0
        %973 = vmatprep.subr.bf16.mxu0 0
        %974 = vmatpush1.bf16.msra.mxu0 0
        %975 = vmatprep.subr.bf16.mxu0 0
        %976 = vmatpush1.bf16.msra.mxu0 0
        %977 = vmatprep.mubr.bf16.mxu0 0
        %978 = vmatmul.mubr.bf16.gmra.mrb[0].mxu0 %v918
        %v979 = vpop.f32.mrb[0].mxu0
        %v980 = vadd.f32 %v899, %v979
        %v981 = vpop.f32.mrb[0].mxu0
        %v982 = vpop.f32.mrb[0].mxu0
        %v983 = vadd.f32 %v899, %v982
        %v984 = vpop.f32.mrb[0].mxu0
        %985 = vmatprep.mubr.bf16.mxu0 0
        %986 = vmatmul.mubr.bf16.gmra.mrb[0].mxu0 %v921
        %v987 = vpop.f32.mrb[0].mxu0
        %v988 = vadd.f32 %v899, %v987
        %v989 = vpop.f32.mrb[0].mxu0
        %v990 = vpop.f32.mrb[0].mxu0
        %v991 = vadd.f32 %v899, %v990
        %v992 = vpop.f32.mrb[0].mxu0
        %993 = vmatprep.mubr.bf16.mxu0 0
        %994 = vmatmul.mubr.bf16.gmra.mrb[0].mxu0 %v924
        %v995 = vpop.f32.mrb[0].mxu0
        %v996 = vadd.f32 %v899, %v995
        %v997 = vpop.f32.mrb[0].mxu0
        %v998 = vpop.f32.mrb[0].mxu0
        %v999 = vadd.f32 %v899, %v998
        %v1000 = vpop.f32.mrb[0].mxu0
        %1001 = vmatprep.mubr.bf16.mxu0 0
        %1002 = vmatmul.mubr.bf16.gmra.mrb[0].mxu0 %v927
        %v1003 = vpop.f32.mrb[0].mxu0
        %v1004 = vadd.f32 %v899, %v1003
        %v1005 = vpop.f32.mrb[0].mxu0
        %v1006 = vpop.f32.mrb[0].mxu0
        %v1007 = vadd.f32 %v899, %v1006
        %v1008 = vpop.f32.mrb[0].mxu0
        %1009 = vmatprep.mubr.bf16.mxu0 0
        %1010 = vmatmul.mubr.bf16.gmra.mrb[0].mxu0 %v930
        %v1011 = vpop.f32.mrb[0].mxu0
        %v1012 = vadd.f32 %v899, %v1011
        %v1013 = vpop.f32.mrb[0].mxu0
        %v1014 = vpop.f32.mrb[0].mxu0
        %v1015 = vadd.f32 %v899, %v1014
        %v1016 = vpop.f32.mrb[0].mxu0
        %1017 = vmatprep.mubr.bf16.mxu0 0
        %1018 = vmatmul.mubr.bf16.gmra.mrb[0].mxu0 %v933
        %v1019 = vpop.f32.mrb[0].mxu0
        %v1020 = vadd.f32 %v899, %v1019
        %v1021 = vpop.f32.mrb[0].mxu0
        %v1022 = vpop.f32.mrb[0].mxu0
        %v1023 = vadd.f32 %v899, %v1022
        %v1024 = vpop.f32.mrb[0].mxu0
        %1025 = vmatprep.mubr.bf16.mxu0 0
        %1026 = vmatmul.mubr.bf16.gmra.mrb[0].mxu0 %v936
        %v1027 = vpop.f32.mrb[0].mxu0
        %v1028 = vadd.f32 %v899, %v1027
        %v1029 = vpop.f32.mrb[0].mxu0
        %v1030 = vpop.f32.mrb[0].mxu0
        %v1031 = vadd.f32 %v899, %v1030
        %v1032 = vpop.f32.mrb[0].mxu0
        %1033 = vmatprep.mubr.bf16.mxu0 0
        %1034 = vmatmul.mubr.bf16.gmra.mrb[0].mxu0 %v939
        %v1035 = vpop.f32.mrb[0].mxu0
        %v1036 = vadd.f32 %v899, %v1035
        %v1037 = vpop.f32.mrb[0].mxu0
        %v1038 = vpop.f32.mrb[0].mxu0
        %v1039 = vadd.f32 %v899, %v1038
        %v1040 = vpop.f32.mrb[0].mxu0
        %1041 = vdwg.mxu0
        %v1042 = vmax.f32 %v980, 0.0
        %v1043 = vmax.f32 %v983, 0.0
        %v1044 = vmax.f32 %v988, 0.0
        %v1045 = vmax.f32 %v991, 0.0
        %v1046 = vmax.f32 %v996, 0.0
        %v1047 = vmax.f32 %v999, 0.0
        %v1048 = vmax.f32 %v1004, 0.0
        %v1049 = vmax.f32 %v1007, 0.0
        %v1050 = vmax.f32 %v1012, 0.0
        %v1051 = vmax.f32 %v1015, 0.0
        %v1052 = vmax.f32 %v1020, 0.0
        %v1053 = vmax.f32 %v1023, 0.0
        %v1054 = vmax.f32 %v1028, 0.0
        %v1055 = vmax.f32 %v1031, 0.0
        %v1056 = vmax.f32 %v1036, 0.0
        %v1057 = vmax.f32 %v1039, 0.0
        %1058 = vst.msk [vmem:[%s187] sm:$0xff] %vm864, %v1042
        %1059 = vst.msk [vmem:[%s187 + $0x8] sm:$0xff] %vm864, %v1043
        %1060 = vst.msk [vmem:[%s187 + $0x10] sm:$0xff] %vm864, %v1044
        %1061 = vst.msk [vmem:[%s187 + $0x18] sm:$0xff] %vm864, %v1045
        %1062 = vst.msk [vmem:[%s187 + $0x20] sm:$0xff] %vm864, %v1046
        %1063 = vst.msk [vmem:[%s187 + $0x28] sm:$0xff] %vm864, %v1047
        %1064 = vst.msk [vmem:[%s187 + $0x30] sm:$0xff] %vm864, %v1048
        %1065 = vst.msk [vmem:[%s187 + $0x38] sm:$0xff] %vm864, %v1049
        %1066 = vst.msk [vmem:[%s187 + $0x40] sm:$0xff] %vm864, %v1050
        %1067 = vst.msk [vmem:[%s187 + $0x48] sm:$0xff] %vm864, %v1051
        %1068 = vst.msk [vmem:[%s187 + $0x50] sm:$0xff] %vm864, %v1052
        %1069 = vst.msk [vmem:[%s187 + $0x58] sm:$0xff] %vm864, %v1053
        %1070 = vst.msk [vmem:[%s187 + $0x60] sm:$0xff] %vm864, %v1054
        %1071 = vst.msk [vmem:[%s187 + $0x68] sm:$0xff] %vm864, %v1055
        %1072 = vst.msk [vmem:[%s187 + $0x70] sm:$0xff] %vm864, %v1056
        %1073 = vst.msk [vmem:[%s187 + $0x78] sm:$0xff] %vm864, %v1057
        %s1074 = sand.u32 %s109, 1
        %s1075 = scalar_lea.sflag [#allocation3], %s1074
        %s1076 = sand.u32 %s109, 1
        %s1077 = smul.addr %s1076, 128
        %s1078 = scalar_lea.vmem [#allocation2], %s1077
        // Predicated region
        $region33: #{tpu_custom_call.1} parent=31 // pred_check
          %p1079 = pneg %p119
        $region34: #{tpu_custom_call.1} parent=31 // pred_check_branch
          %1081 = sbr.rel (%p1079) target = $region36
        $region35: #{tpu_custom_call.1} parent=31 // pred_region
          %s1082 = smul.u32 8, %s22
          %s1084 = ssub.s32 2048, 2048
          %1085 = vsyncadd %s1075, %s1084
          %s1086 = smul.addr %s1082, 2
          %s1087 = smul.addr %s21, 32
          %s1088 = sadd.s32 %s1086, %s1087
          %s1089 = smul.addr %s1088, 128
          %s1090 = scalar_lea.hbm %s3, %s1089
          %s1091 = sshll.u32 %s1078, 4
          %s1092 = int_to_ptr.vmem [resolvable:$true] %s1091
          %1097 = dma.vmem_to_hbm [thread:$0]  %s1092, 2048, %s1090, %s1075, 128, 128, 8
        $region36: #{tpu_custom_call.1} parent=31 // pred_fallthru
          _
      $region32: #{tpu_custom_call.1} parent=5 // pred_fallthru
        _
      %p1098 = scmp.le.s32.totalorder 2, %s12
      // Predicated region
      $region37: #{tpu_custom_call.1} parent=5 // pred_check
        %p1099 = pneg %p1098
      $region38: #{tpu_custom_call.1} parent=5 // pred_check_branch
        %1101 = sbr.rel (%p1099) target = $region40
      $region39: #{tpu_custom_call.1} parent=5 // pred_region
        %s1102 = ssub.s32 %s12, 2
        // Predicated region
        $region41: #{tpu_custom_call.1} parent=39 // pred_check
          %p1103 = pneg %p125
        $region42: #{tpu_custom_call.1} parent=39 // pred_check_branch
          %1105 = sbr.rel (%p1103) target = $region44
        $region43: #{tpu_custom_call.1} parent=39 // pred_region
          %s1106 = sand.u32 %s110, 1
          %s1107 = scalar_lea.sflag [#allocation3], %s1106
          %s1108 = sand.u32 %s110, 1
          %s1109 = smul.addr %s1108, 128
          %s1110 = scalar_lea.vmem [#allocation2], %s1109
          %1111 = dma.done %s1107, 2048
        $region44: #{tpu_custom_call.1} parent=39 // pred_fallthru
          _
      $region40: #{tpu_custom_call.1} parent=5 // pred_fallthru
        _
    $region6: #{tpu_custom_call.1} parent=1 // loop_footer
      %s16 = sadd.s32 1, %s12
    $region7: #{tpu_custom_call.1} parent=1 // loop_footer_branch
      %11 = sbr.rel target = $region3
    $region8: #{tpu_custom_call.1} parent=1 // loop_exit
      _
    %1112 = vsyncpa [#allocation3], 1
    %s1113 = scalar_lea.sflag [#allocation3], 1
    %1114 = vsyncpa %s1113, 1

</llo_original>
